<compile_context>
chip_gen: v7x
topology: tpu7x:2x2x1
jax: 0.10.0
libtpu: 0.0.40
codegen_flags: <defaults>
</compile_context>

<pallas_src>
import jax
import jax.numpy as jnp
from jax.experimental import pallas as pl
from jax.experimental.pallas import tpu as pltpu


def qnet_kernel(x_ref, w1t_ref, w2t_ref, w3r_ref, b12_ref, b3_ref, o_ref):
    # Layer 1: (H, in) @ (in, TB) -> (H, TB), bias broadcast along lanes.
    h1 = jnp.dot(w1t_ref[...], x_ref[...], preferred_element_type=jnp.float32)
    h1 = jnp.maximum(h1 + b12_ref[:, 0:1], 0.0)

    # Layer 2: (H, H) @ (H, TB) -> (H, TB).
    h2 = jnp.dot(w2t_ref[...], h1, preferred_element_type=jnp.float32)
    h2 = jnp.maximum(h2 + b12_ref[:, 1:2], 0.0)

    # Layer 3: (1, H) @ (H, TB) -> (1, TB); lane-dense output row.
    q = jnp.dot(w3r_ref[...], h2, preferred_element_type=jnp.float32)
    o_ref[...] = (q + b3_ref[0, 0]).astype(o_ref.dtype)


def _round_up(n, m):
    return ((n + m - 1) // m) * m


def _pick_batch_tile(padded_batch):
    # Favor big tiles (grid-step overhead dominates at this size) but keep
    # at least 2 grid steps when possible so v7x's two TCs both get work.
    for tb in (4096, 2048, 1024, 512, 256, 128):
        if padded_batch % tb == 0 and padded_batch // tb >= 2:
            return tb
    return 128  # padded_batch == 128: single-step grid


def prepare_qnet_params(params):
    """One-time reshaping of PyTorch-style params for the kernel."""
    w1, b1, w2, b2, w3, b3 = params
    in_dim = w1.shape[0]
    pad_in = _round_up(in_dim, 8) - in_dim
    w1t = w1.T                                     # (H, in_dim)
    if pad_in:
        w1t = jnp.pad(w1t, ((0, 0), (0, pad_in)))  # (H, in_dim_padded)
    w2t = w2.T                                     # (H, H)
    w3r = w3.T                                     # (1, H)
    b12 = jnp.stack([b1, b2], axis=1)              # (H, 2) column pair
    b3s = b3.reshape(1, 1)                         # SMEM scalar
    return (w1t, w2t, w3r, b12, b3s)


@jax.jit
def qnet_forward(state, action, prepared):
    w1t, w2t, w3r, b12, b3s = prepared
    batch = state.shape[0]
    h_dim = w1t.shape[0]
    in_pad = w1t.shape[1]

    # Pre-pack [state, action] and go feature-major: (in_dim, batch).
    x = jnp.concatenate([state, action], axis=1).T        # (in_dim, batch)

    # Pad feature rows to the padded in_dim and batch lanes to a multiple of 128.
    pb = _round_up(batch, 128)
    x = jnp.pad(x, ((0, in_pad - x.shape[0]), (0, pb - batch)))

    tb = _pick_batch_tile(pb)
    grid = (pb // tb,)

    out = pl.pallas_call(
        qnet_kernel,
        out_shape=jax.ShapeDtypeStruct((1, pb), jnp.float32),
        grid=grid,
        in_specs=[
            pl.BlockSpec((in_pad, tb), lambda i: (0, i)),    # packed input tile
            pl.BlockSpec((h_dim, in_pad), lambda i: (0, 0)),  # W1^T (resident)
            pl.BlockSpec((h_dim, h_dim), lambda i: (0, 0)),   # W2^T (resident)
            pl.BlockSpec((1, h_dim), lambda i: (0, 0)),       # W3^T row
            pl.BlockSpec((h_dim, 2), lambda i: (0, 0)),       # packed b1|b2
            pl.BlockSpec((1, 1), lambda i: (0, 0),
                         memory_space=pltpu.MemorySpace.SMEM),  # b3 scalar
        ],
        out_specs=pl.BlockSpec((1, tb), lambda i: (0, i)),    # lane-dense row
        compiler_params=pltpu.CompilerParams(
            dimension_semantics=("parallel",),
            vmem_limit_bytes=32 * 1024 * 1024,
        ),
    )(x, w1t, w2t, w3r, b12, b3s)

    return out.reshape(pb, 1)[:batch]                         # (batch, 1)


def xavier_uniform(key, fan_in, fan_out):
    # Matches torch.nn.init.xavier_uniform_ (gain=1).
    bound = jnp.sqrt(6.0 / (fan_in + fan_out))
    return jax.random.uniform(key, (fan_in, fan_out), jnp.float32,
                              minval=-bound, maxval=bound)


def init_qnet_params(key, state_dim, action_dim, hidden_dim):
    # PyTorch-equivalent layout: W stored as (in_features, out_features).
    k1, k2, k3 = jax.random.split(key, 3)
    in_dim = state_dim + action_dim
    w1 = xavier_uniform(k1, in_dim, hidden_dim)
    b1 = jnp.zeros((hidden_dim,), jnp.float32)
    w2 = xavier_uniform(k2, hidden_dim, hidden_dim)
    b2 = jnp.zeros((hidden_dim,), jnp.float32)
    w3 = xavier_uniform(k3, hidden_dim, 1)
    b3 = jnp.zeros((1,), jnp.float32)
    return (w1, b1, w2, b2, w3, b3)


def qnet_reference(state, action, params):
    w1, b1, w2, b2, w3, b3 = params
    x = jnp.concatenate([state, action], axis=1)
    x = jnp.maximum(x @ w1 + b1, 0.0)
    x = jnp.maximum(x @ w2 + b2, 0.0)
    return x @ w3 + b3


if __name__ == "__main__":
    state_dim, action_dim, hidden_dim = 12, 4, 32

    key = jax.random.PRNGKey(0)
    k_params, k_data = jax.random.split(key, 2)

    params = init_qnet_params(k_params, state_dim, action_dim, hidden_dim)
    prepared = prepare_qnet_params(params)

    # Small batch (padded to 128 lanes, single grid step).
    k_s, k_a, k_s2, k_a2 = jax.random.split(k_data, 4)
    state = jax.random.normal(k_s, (8, state_dim), jnp.float32)
    action = jax.random.normal(k_a, (8, action_dim), jnp.float32)
    q = qnet_forward(state, action, prepared)
    jax.block_until_ready(q)
    q_ref = qnet_reference(state, action, params)
    assert q.shape == (8, 1)
    assert jnp.allclose(q, q_ref, atol=1e-4, rtol=1e-4)

    # Larger batch exercising the multi-step (megacore-shardable) grid.
    state2 = jax.random.normal(k_s2, (512, state_dim), jnp.float32)
    action2 = jax.random.normal(k_a2, (512, action_dim), jnp.float32)
    q2 = qnet_forward(state2, action2, prepared)
    jax.block_until_ready(q2)
    q2_ref = qnet_reference(state2, action2, params)
    assert q2.shape == (512, 1)
    assert jnp.allclose(q2, q2_ref, atol=1e-4, rtol=1e-4)

    print("KERNEL_OK")
</pallas_src>

<mosaic_0001>
module attributes {stable_mosaic.version = 11 : i64} {
  func.func @qnet_kernel(%arg0: i32, %arg1: memref<16x128xf32, #tpu.memory_space<vmem>>, %arg2: memref<32x16xf32, #tpu.memory_space<vmem>>, %arg3: memref<32x32xf32, #tpu.memory_space<vmem>>, %arg4: memref<1x32xf32, #tpu.memory_space<vmem>>, %arg5: memref<32x2xf32, #tpu.memory_space<vmem>>, %arg6: memref<1x1xf32, #tpu.memory_space<smem>>, %arg7: memref<1x128xf32, #tpu.memory_space<vmem>>) attributes {dimension_semantics = [#tpu.dimension_semantics<parallel>], iteration_bounds = array<i64: 1>, scalar_prefetch = 0 : i64, scratch_operands = 0 : i64, tpu.core_type = #tpu.core_type<tc>, window_params = [{transform_indices = @transform_0, window_bounds = array<i64: 16, 128>}, {pipeline_mode = #tpu.pipeline_mode<synchronous>, transform_indices = @transform_1, window_bounds = array<i64: 32, 16>}, {pipeline_mode = #tpu.pipeline_mode<synchronous>, transform_indices = @transform_2, window_bounds = array<i64: 32, 32>}, {pipeline_mode = #tpu.pipeline_mode<synchronous>, transform_indices = @transform_3, window_bounds = array<i64: 1, 32>}, {pipeline_mode = #tpu.pipeline_mode<synchronous>, transform_indices = @transform_4, window_bounds = array<i64: 32, 2>}, {transform_indices = @transform_5, window_bounds = array<i64: 1, 1>}, {transform_indices = @transform_6, window_bounds = array<i64: 1, 128>}]} {
    %c0 = arith.constant 0 : index
    %c0_0 = arith.constant 0 : index
    %0 = vector.load %arg2[%c0, %c0_0] : memref<32x16xf32, #tpu.memory_space<vmem>>, vector<32x16xf32>
    %c0_1 = arith.constant 0 : index
    %c0_2 = arith.constant 0 : index
    %1 = vector.load %arg1[%c0_1, %c0_2] : memref<16x128xf32, #tpu.memory_space<vmem>>, vector<16x128xf32>
    %cst = arith.constant dense<0.000000e+00> : vector<32x128xf32>
    %2 = tpu.matmul %0, %1, %cst {dimension_numbers = #tpu.dot_dimension_numbers<[1], [0], [0], [1], [0, 0, 1, 1], [], []>} : vector<32x16xf32>, vector<16x128xf32>, vector<32x128xf32> -> vector<32x128xf32>
    %c0_3 = arith.constant 0 : index
    %c0_4 = arith.constant 0 : index
    %3 = vector.load %arg5[%c0_3, %c0_4] : memref<32x2xf32, #tpu.memory_space<vmem>>, vector<32x1xf32>
    %4 = vector.broadcast %3 : vector<32x1xf32> to vector<32x128xf32>
    %5 = arith.addf %2, %4 : vector<32x128xf32>
    %cst_5 = arith.constant 0.000000e+00 : f32
    %6 = vector.broadcast %cst_5 : f32 to vector<32x128xf32>
    %7 = arith.maximumf %5, %6 : vector<32x128xf32>
    %c0_6 = arith.constant 0 : index
    %c0_7 = arith.constant 0 : index
    %8 = vector.load %arg3[%c0_6, %c0_7] : memref<32x32xf32, #tpu.memory_space<vmem>>, vector<32x32xf32>
    %cst_8 = arith.constant dense<0.000000e+00> : vector<32x128xf32>
    %9 = tpu.matmul %8, %7, %cst_8 {dimension_numbers = #tpu.dot_dimension_numbers<[1], [0], [0], [1], [0, 0, 1, 1], [], []>} : vector<32x32xf32>, vector<32x128xf32>, vector<32x128xf32> -> vector<32x128xf32>
    %c0_9 = arith.constant 0 : index
    %c1 = arith.constant 1 : index
    %10 = vector.load %arg5[%c0_9, %c1] : memref<32x2xf32, #tpu.memory_space<vmem>>, vector<32x1xf32>
    %11 = vector.broadcast %10 : vector<32x1xf32> to vector<32x128xf32>
    %12 = arith.addf %9, %11 : vector<32x128xf32>
    %cst_10 = arith.constant 0.000000e+00 : f32
    %13 = vector.broadcast %cst_10 : f32 to vector<32x128xf32>
    %14 = arith.maximumf %12, %13 : vector<32x128xf32>
    %c0_11 = arith.constant 0 : index
    %c0_12 = arith.constant 0 : index
    %15 = vector.load %arg4[%c0_11, %c0_12] : memref<1x32xf32, #tpu.memory_space<vmem>>, vector<1x32xf32>
    %cst_13 = arith.constant dense<0.000000e+00> : vector<1x128xf32>
    %16 = tpu.matmul %15, %14, %cst_13 {dimension_numbers = #tpu.dot_dimension_numbers<[1], [0], [0], [1], [0, 0, 1, 1], [], []>} : vector<1x32xf32>, vector<32x128xf32>, vector<1x128xf32> -> vector<1x128xf32>
    %c0_14 = arith.constant 0 : index
    %c0_15 = arith.constant 0 : index
    %17 = memref.load %arg6[%c0_14, %c0_15] : memref<1x1xf32, #tpu.memory_space<smem>>
    %18 = vector.broadcast %17 : f32 to vector<1x128xf32>
    %19 = arith.addf %16, %18 : vector<1x128xf32>
    %c0_16 = arith.constant 0 : index
    %c0_17 = arith.constant 0 : index
    %20 = vector.load %arg7[%c0_16, %c0_17] : memref<1x128xf32, #tpu.memory_space<vmem>>, vector<1x128xf32>
    tpu.vector_store %arg7[%c0_16, %c0_17], %19 {strides = array<i32>} : memref<1x128xf32, #tpu.memory_space<vmem>>, vector<1x128xf32>,
    return
  }
  func.func @transform_0(%arg0: i32) -> (i32, i32) {
    %c0_i32 = arith.constant 0 : i32
    %c0_i32_0 = arith.constant 0 : i32
    return %c0_i32, %arg0 : i32, i32
  }
  func.func @transform_1(%arg0: i32) -> (i32, i32) {
    %c0_i32 = arith.constant 0 : i32
    %c0_i32_0 = arith.constant 0 : i32
    %c0_i32_1 = arith.constant 0 : i32
    return %c0_i32, %c0_i32_0 : i32, i32
  }
  func.func @transform_2(%arg0: i32) -> (i32, i32) {
    %c0_i32 = arith.constant 0 : i32
    %c0_i32_0 = arith.constant 0 : i32
    %c0_i32_1 = arith.constant 0 : i32
    return %c0_i32, %c0_i32_0 : i32, i32
  }
  func.func @transform_3(%arg0: i32) -> (i32, i32) {
    %c0_i32 = arith.constant 0 : i32
    %c0_i32_0 = arith.constant 0 : i32
    %c0_i32_1 = arith.constant 0 : i32
    return %c0_i32, %c0_i32_0 : i32, i32
  }
  func.func @transform_4(%arg0: i32) -> (i32, i32) {
    %c0_i32 = arith.constant 0 : i32
    %c0_i32_0 = arith.constant 0 : i32
    %c0_i32_1 = arith.constant 0 : i32
    return %c0_i32, %c0_i32_0 : i32, i32
  }
  func.func @transform_5(%arg0: i32) -> (i32, i32) {
    %c0_i32 = arith.constant 0 : i32
    %c0_i32_0 = arith.constant 0 : i32
    %c0_i32_1 = arith.constant 0 : i32
    return %c0_i32, %c0_i32_0 : i32, i32
  }
  func.func @transform_6(%arg0: i32) -> (i32, i32) {
    %c0_i32 = arith.constant 0 : i32
    %c0_i32_0 = arith.constant 0 : i32
    return %c0_i32, %arg0 : i32, i32
  }
}

</mosaic_0001>

<llo_original>
// kernel: qnet_forward.1
$region0: #{qnet_forward.1}
  #allocation0 [shape = 'u32[]', space=smem, size = 0x4, offset = 0x4, fixed_abs, tag = 'smem constant byte address 0x4 - core index']
  #allocation1 [shape = 'u32[144,128]{1,0:T(1,128)}', space=vmem, size = 0x12000, scoped, tag = 'internal scratch']
  #allocation2 [shape = 'f32[1,1]{1,0:T(1,128)S(6)}', space=smem, size = 0x200, scoped, tag = 'scoped memory for qnet_forward.1']
  %s0 = inlined_call_operand.vmem [shape: f32[16,128], index: 0, kind: input, shape index: {}]
  %s1 = inlined_call_operand.vmem [shape: f32[32,16], index: 1, kind: input, shape index: {}]
  %s2 = inlined_call_operand.vmem [shape: f32[32,32], index: 2, kind: input, shape index: {}]
  %s3 = inlined_call_operand.vmem [shape: f32[1,32], index: 3, kind: input, shape index: {}]
  %s4 = inlined_call_operand.vmem [shape: f32[32,2], index: 4, kind: input, shape index: {}]
  %s5 = inlined_call_operand.<no memory space> [shape: f32[1,1], index: 5, kind: input, shape index: {}]
  %s6 = inlined_call_operand.vmem [shape: f32[1,128], index: 6, kind: output, shape index: {}]
  %s7 = sld [smem:[#allocation0]]
  $region34: #{qnet_forward.1} parent=0
    _
  %s9 = ssub.s32 1, %s7
  %s10 = scalar_select 0, %s9, %s7
  %11 = sst [smem:[#allocation2]] %s5
  // Predicated region
  $region2: #{qnet_forward.1} parent=0 // pred_check
    _
  $region3: #{qnet_forward.1} parent=0 // pred_check_branch
    %13 = sbr.rel (0) target = $region5
  $region4: #{qnet_forward.1} parent=0 // pred_region
    _
  $region5: #{qnet_forward.1} parent=0 // pred_fallthru
    _
  // Predicated region
  $region6: #{qnet_forward.1} parent=0 // pred_check
    _
  $region7: #{qnet_forward.1} parent=0 // pred_check_branch
    %15 = sbr.rel (0) target = $region9
  $region8: #{qnet_forward.1} parent=0 // pred_region
    _
  $region9: #{qnet_forward.1} parent=0 // pred_fallthru
    _
  // Predicated region
  $region10: #{qnet_forward.1} parent=0 // pred_check
    _
  $region11: #{qnet_forward.1} parent=0 // pred_check_branch
    %17 = sbr.rel (0) target = $region13
  $region12: #{qnet_forward.1} parent=0 // pred_region
    _
  $region13: #{qnet_forward.1} parent=0 // pred_fallthru
    _
  // Predicated region
  $region14: #{qnet_forward.1} parent=0 // pred_check
    _
  $region15: #{qnet_forward.1} parent=0 // pred_check_branch
    %19 = sbr.rel (0) target = $region17
  $region16: #{qnet_forward.1} parent=0 // pred_region
    _
  $region17: #{qnet_forward.1} parent=0 // pred_fallthru
    _
  // Predicated region
  $region18: #{qnet_forward.1} parent=0 // pred_check
    _
  $region19: #{qnet_forward.1} parent=0 // pred_check_branch
    %21 = sbr.rel (0) target = $region21
  $region20: #{qnet_forward.1} parent=0 // pred_region
    _
  $region21: #{qnet_forward.1} parent=0 // pred_fallthru
    _
  // Predicated region
  $region22: #{qnet_forward.1} parent=0 // pred_check
    _
  $region23: #{qnet_forward.1} parent=0 // pred_check_branch
    %23 = sbr.rel (0) target = $region25
  $region24: #{qnet_forward.1} parent=0 // pred_region
    _
  $region25: #{qnet_forward.1} parent=0 // pred_fallthru
    _
  %v24 = vld [vmem:[%s1] sm:$0xff]
  %v25 = vld [vmem:[%s1 + $0x8] sm:$0xff]
  %v26 = vld [vmem:[%s1 + $0x10] sm:$0xff]
  %v27 = vld [vmem:[%s1 + $0x18] sm:$0xff]
  %v28 = vld [vmem:[%s0] sm:$0xff]
  %v29 = vld [vmem:[%s0 + $0x8] sm:$0xff]
  %v30 = vld [vmem:[%s4] sm:$0xff]
  %v31 = vld [vmem:[%s4 + $0x8] sm:$0xff]
  %v32 = vld [vmem:[%s4 + $0x10] sm:$0xff]
  %v33 = vld [vmem:[%s4 + $0x18] sm:$0xff]
  %35 = vset.pattern.permute.xlu0 0
  %36 = vperm.xlu0 %35, %v30
  %v37 = vpop.permute.xlu0 %36
  %40 = vset.pattern.permute.xlu0 0
  %41 = vperm.xlu0 %40, %v31
  %v42 = vpop.permute.xlu0 %41
  %45 = vset.pattern.permute.xlu0 0
  %46 = vperm.xlu0 %45, %v32
  %v47 = vpop.permute.xlu0 %46
  %50 = vset.pattern.permute.xlu0 0
  %51 = vperm.xlu0 %50, %v33
  %v52 = vpop.permute.xlu0 %51
  %vm54 = vcmask 130048
  %v56 = vsel %vm54, %v24, 0
  %v59 = vsel %vm54, %v25, 0
  %v62 = vsel %vm54, %v26, 0
  %v65 = vsel %vm54, %v27, 0
  %67 = vmatprep.subr.mxu0 0.0
  %68 = vmatpush1.msra.mxu0 %v28
  %69 = vmatprep.subr.mxu0 0.0
  %70 = vmatpush1.msra.mxu0 %v29
  %71 = vmatprep.subr.mxu0 0.0
  %72 = vmatpush1.msra.mxu0 0.0
  %73 = vmatprep.subr.mxu0 0.0
  %74 = vmatpush1.msra.mxu0 0.0
  %75 = vmatprep.subr.mxu0 0.0
  %76 = vmatpush1.msra.mxu0 0.0
  %77 = vmatprep.subr.mxu0 0.0
  %78 = vmatpush1.msra.mxu0 0.0
  %79 = vmatprep.subr.mxu0 0.0
  %80 = vmatpush1.msra.mxu0 0.0
  %81 = vmatprep.subr.mxu0 0.0
  %82 = vmatpush1.msra.mxu0 0.0
  %83 = vmatprep.subr.mxu0 0.0
  %84 = vmatpush1.msra.mxu0 0.0
  %85 = vmatprep.subr.mxu0 0.0
  %86 = vmatpush1.msra.mxu0 0.0
  %87 = vmatprep.subr.mxu0 0.0
  %88 = vmatpush1.msra.mxu0 0.0
  %89 = vmatprep.subr.mxu0 0.0
  %90 = vmatpush1.msra.mxu0 0.0
  %91 = vmatprep.subr.mxu0 0.0
  %92 = vmatpush1.msra.mxu0 0.0
  %93 = vmatprep.subr.mxu0 0.0
  %94 = vmatpush1.msra.mxu0 0.0
  %95 = vmatprep.subr.mxu0 0.0
  %96 = vmatpush1.msra.mxu0 0.0
  %97 = vmatprep.subr.mxu0 0.0
  %98 = vmatpush1.msra.mxu0 0.0
  %99 = vmatprep.subr.mxu0 0.0
  %100 = vmatpush1.msra.mxu0 0.0
  %101 = vmatprep.subr.mxu0 0.0
  %102 = vmatpush1.msra.mxu0 0.0
  %103 = vmatprep.subr.mxu0 0.0
  %104 = vmatpush1.msra.mxu0 0.0
  %105 = vmatprep.subr.mxu0 0.0
  %106 = vmatpush1.msra.mxu0 0.0
  %107 = vmatprep.subr.mxu0 0.0
  %108 = vmatpush1.msra.mxu0 0.0
  %109 = vmatprep.subr.mxu0 0.0
  %110 = vmatpush1.msra.mxu0 0.0
  %111 = vmatprep.subr.mxu0 0.0
  %112 = vmatpush1.msra.mxu0 0.0
  %113 = vmatprep.subr.mxu0 0.0
  %114 = vmatpush1.msra.mxu0 0.0
  %115 = vmatprep.subr.mxu0 0.0
  %116 = vmatpush1.msra.mxu0 0.0
  %117 = vmatprep.subr.mxu0 0.0
  %118 = vmatpush1.msra.mxu0 0.0
  %119 = vmatprep.subr.mxu0 0.0
  %120 = vmatpush1.msra.mxu0 0.0
  %121 = vmatprep.subr.mxu0 0.0
  %122 = vmatpush1.msra.mxu0 0.0
  %123 = vmatprep.subr.mxu0 0.0
  %124 = vmatpush1.msra.mxu0 0.0
  %125 = vmatprep.subr.mxu0 0.0
  %126 = vmatpush1.msra.mxu0 0.0
  %127 = vmatprep.subr.mxu0 0.0
  %128 = vmatpush1.msra.mxu0 0.0
  %129 = vmatprep.subr.mxu0 0.0
  %130 = vmatpush1.msra.mxu0 0.0
  %131 = vmatprep.mubr.f32.mxu0 0.0
  %132 = vmatmul.mubr.f32.gmra.mrb[0].mxu0 %v56
  %v133 = vpop.f32.mrb[0].mxu0
  %v134 = vadd.f32 %v37, %v133
  %v135 = vpop.f32.mrb[0].mxu0
  %136 = vmatprep.mubr.f32.mxu0 0.0
  %137 = vmatmul.mubr.f32.gmra.mrb[0].mxu0 %v59
  %v138 = vpop.f32.mrb[0].mxu0
  %v139 = vadd.f32 %v42, %v138
  %v140 = vpop.f32.mrb[0].mxu0
  %141 = vmatprep.mubr.f32.mxu0 0.0
  %142 = vmatmul.mubr.f32.gmra.mrb[0].mxu0 %v62
  %v143 = vpop.f32.mrb[0].mxu0
  %v144 = vadd.f32 %v47, %v143
  %v145 = vpop.f32.mrb[0].mxu0
  %146 = vmatprep.mubr.f32.mxu0 0.0
  %147 = vmatmul.mubr.f32.gmra.mrb[0].mxu0 %v65
  %v148 = vpop.f32.mrb[0].mxu0
  %v149 = vadd.f32 %v52, %v148
  %v150 = vpop.f32.mrb[0].mxu0
  %151 = vdwg.mxu0
  %v152 = vmax.f32 %v134, 0.0
  %v153 = vmax.f32 %v139, 0.0
  %v154 = vmax.f32 %v144, 0.0
  %v155 = vmax.f32 %v149, 0.0
  %v156 = vld [vmem:[%s2] sm:$0xff]
  %v157 = vld [vmem:[%s2 + $0x8] sm:$0xff]
  %v158 = vld [vmem:[%s2 + $0x10] sm:$0xff]
  %v159 = vld [vmem:[%s2 + $0x18] sm:$0xff]
  %160 = vset.pattern.permute.xlu0 1
  %161 = vperm.xlu0 %160, %v30
  %v162 = vpop.permute.xlu0 %161
  %164 = vset.pattern.permute.xlu0 1
  %165 = vperm.xlu0 %164, %v31
  %v166 = vpop.permute.xlu0 %165
  %168 = vset.pattern.permute.xlu0 1
  %169 = vperm.xlu0 %168, %v32
  %v170 = vpop.permute.xlu0 %169
  %172 = vset.pattern.permute.xlu0 1
  %173 = vperm.xlu0 %172, %v33
  %v174 = vpop.permute.xlu0 %173
  %vm176 = vcmask 261120
  %v178 = vsel %vm176, %v156, 0
  %v181 = vsel %vm176, %v157, 0
  %v184 = vsel %vm176, %v158, 0
  %v187 = vsel %vm176, %v159, 0
  %189 = vmatprep.subr.mxu0 0.0
  %190 = vmatpush1.msra.mxu0 %v152
  %191 = vmatprep.subr.mxu0 0.0
  %192 = vmatpush1.msra.mxu0 %v153
  %193 = vmatprep.subr.mxu0 0.0
  %194 = vmatpush1.msra.mxu0 %v154
  %195 = vmatprep.subr.mxu0 0.0
  %196 = vmatpush1.msra.mxu0 %v155
  %197 = vmatprep.subr.mxu0 0.0
  %198 = vmatpush1.msra.mxu0 0.0
  %199 = vmatprep.subr.mxu0 0.0
  %200 = vmatpush1.msra.mxu0 0.0
  %201 = vmatprep.subr.mxu0 0.0
  %202 = vmatpush1.msra.mxu0 0.0
  %203 = vmatprep.subr.mxu0 0.0
  %204 = vmatpush1.msra.mxu0 0.0
  %205 = vmatprep.subr.mxu0 0.0
  %206 = vmatpush1.msra.mxu0 0.0
  %207 = vmatprep.subr.mxu0 0.0
  %208 = vmatpush1.msra.mxu0 0.0
  %209 = vmatprep.subr.mxu0 0.0
  %210 = vmatpush1.msra.mxu0 0.0
  %211 = vmatprep.subr.mxu0 0.0
  %212 = vmatpush1.msra.mxu0 0.0
  %213 = vmatprep.subr.mxu0 0.0
  %214 = vmatpush1.msra.mxu0 0.0
  %215 = vmatprep.subr.mxu0 0.0
  %216 = vmatpush1.msra.mxu0 0.0
  %217 = vmatprep.subr.mxu0 0.0
  %218 = vmatpush1.msra.mxu0 0.0
  %219 = vmatprep.subr.mxu0 0.0
  %220 = vmatpush1.msra.mxu0 0.0
  %221 = vmatprep.subr.mxu0 0.0
  %222 = vmatpush1.msra.mxu0 0.0
  %223 = vmatprep.subr.mxu0 0.0
  %224 = vmatpush1.msra.mxu0 0.0
  %225 = vmatprep.subr.mxu0 0.0
  %226 = vmatpush1.msra.mxu0 0.0
  %227 = vmatprep.subr.mxu0 0.0
  %228 = vmatpush1.msra.mxu0 0.0
  %229 = vmatprep.subr.mxu0 0.0
  %230 = vmatpush1.msra.mxu0 0.0
  %231 = vmatprep.subr.mxu0 0.0
  %232 = vmatpush1.msra.mxu0 0.0
  %233 = vmatprep.subr.mxu0 0.0
  %234 = vmatpush1.msra.mxu0 0.0
  %235 = vmatprep.subr.mxu0 0.0
  %236 = vmatpush1.msra.mxu0 0.0
  %237 = vmatprep.subr.mxu0 0.0
  %238 = vmatpush1.msra.mxu0 0.0
  %239 = vmatprep.subr.mxu0 0.0
  %240 = vmatpush1.msra.mxu0 0.0
  %241 = vmatprep.subr.mxu0 0.0
  %242 = vmatpush1.msra.mxu0 0.0
  %243 = vmatprep.subr.mxu0 0.0
  %244 = vmatpush1.msra.mxu0 0.0
  %245 = vmatprep.subr.mxu0 0.0
  %246 = vmatpush1.msra.mxu0 0.0
  %247 = vmatprep.subr.mxu0 0.0
  %248 = vmatpush1.msra.mxu0 0.0
  %249 = vmatprep.subr.mxu0 0.0
  %250 = vmatpush1.msra.mxu0 0.0
  %251 = vmatprep.subr.mxu0 0.0
  %252 = vmatpush1.msra.mxu0 0.0
  %253 = vmatprep.mubr.f32.mxu0 0.0
  %254 = vmatmul.mubr.f32.gmra.mrb[0].mxu0 %v178
  %v255 = vpop.f32.mrb[0].mxu0
  %v256 = vadd.f32 %v162, %v255
  %v257 = vpop.f32.mrb[0].mxu0
  %258 = vmatprep.mubr.f32.mxu0 0.0
  %259 = vmatmul.mubr.f32.gmra.mrb[0].mxu0 %v181
  %v260 = vpop.f32.mrb[0].mxu0
  %v261 = vadd.f32 %v166, %v260
  %v262 = vpop.f32.mrb[0].mxu0
  %263 = vmatprep.mubr.f32.mxu0 0.0
  %264 = vmatmul.mubr.f32.gmra.mrb[0].mxu0 %v184
  %v265 = vpop.f32.mrb[0].mxu0
  %v266 = vadd.f32 %v170, %v265
  %v267 = vpop.f32.mrb[0].mxu0
  %268 = vmatprep.mubr.f32.mxu0 0.0
  %269 = vmatmul.mubr.f32.gmra.mrb[0].mxu0 %v187
  %v270 = vpop.f32.mrb[0].mxu0
  %v271 = vadd.f32 %v174, %v270
  %v272 = vpop.f32.mrb[0].mxu0
  %273 = vdwg.mxu0
  %v274 = vmax.f32 %v256, 0.0
  %v275 = vmax.f32 %v261, 0.0
  %v276 = vmax.f32 %v266, 0.0
  %v277 = vmax.f32 %v271, 0.0
  %v278 = vld [vmem:[%s3] sm:$0x1]
  %s279 = sld [smem:[#allocation2]]
  %v280 = vstv %s279
  %v282 = vsel %vm176, %v278, 0
  %284 = vmatprep.subr.mxu0 0.0
  %285 = vmatpush1.msra.mxu0 %v274
  %286 = vmatprep.subr.mxu0 0.0
  %287 = vmatpush1.msra.mxu0 %v275
  %288 = vmatprep.subr.mxu0 0.0
  %289 = vmatpush1.msra.mxu0 %v276
  %290 = vmatprep.subr.mxu0 0.0
  %291 = vmatpush1.msra.mxu0 %v277
  %292 = vmatprep.subr.mxu0 0.0
  %293 = vmatpush1.msra.mxu0 0.0
  %294 = vmatprep.subr.mxu0 0.0
  %295 = vmatpush1.msra.mxu0 0.0
  %296 = vmatprep.subr.mxu0 0.0
  %297 = vmatpush1.msra.mxu0 0.0
  %298 = vmatprep.subr.mxu0 0.0
  %299 = vmatpush1.msra.mxu0 0.0
  %300 = vmatprep.subr.mxu0 0.0
  %301 = vmatpush1.msra.mxu0 0.0
  %302 = vmatprep.subr.mxu0 0.0
  %303 = vmatpush1.msra.mxu0 0.0
  %304 = vmatprep.subr.mxu0 0.0
  %305 = vmatpush1.msra.mxu0 0.0
  %306 = vmatprep.subr.mxu0 0.0
  %307 = vmatpush1.msra.mxu0 0.0
  %308 = vmatprep.subr.mxu0 0.0
  %309 = vmatpush1.msra.mxu0 0.0
  %310 = vmatprep.subr.mxu0 0.0
  %311 = vmatpush1.msra.mxu0 0.0
  %312 = vmatprep.subr.mxu0 0.0
  %313 = vmatpush1.msra.mxu0 0.0
  %314 = vmatprep.subr.mxu0 0.0
  %315 = vmatpush1.msra.mxu0 0.0
  %316 = vmatprep.subr.mxu0 0.0
  %317 = vmatpush1.msra.mxu0 0.0
  %318 = vmatprep.subr.mxu0 0.0
  %319 = vmatpush1.msra.mxu0 0.0
  %320 = vmatprep.subr.mxu0 0.0
  %321 = vmatpush1.msra.mxu0 0.0
  %322 = vmatprep.subr.mxu0 0.0
  %323 = vmatpush1.msra.mxu0 0.0
  %324 = vmatprep.subr.mxu0 0.0
  %325 = vmatpush1.msra.mxu0 0.0
  %326 = vmatprep.subr.mxu0 0.0
  %327 = vmatpush1.msra.mxu0 0.0
  %328 = vmatprep.subr.mxu0 0.0
  %329 = vmatpush1.msra.mxu0 0.0
  %330 = vmatprep.subr.mxu0 0.0
  %331 = vmatpush1.msra.mxu0 0.0
  %332 = vmatprep.subr.mxu0 0.0
  %333 = vmatpush1.msra.mxu0 0.0
  %334 = vmatprep.subr.mxu0 0.0
  %335 = vmatpush1.msra.mxu0 0.0
  %336 = vmatprep.subr.mxu0 0.0
  %337 = vmatpush1.msra.mxu0 0.0
  %338 = vmatprep.subr.mxu0 0.0
  %339 = vmatpush1.msra.mxu0 0.0
  %340 = vmatprep.subr.mxu0 0.0
  %341 = vmatpush1.msra.mxu0 0.0
  %342 = vmatprep.subr.mxu0 0.0
  %343 = vmatpush1.msra.mxu0 0.0
  %344 = vmatprep.subr.mxu0 0.0
  %345 = vmatpush1.msra.mxu0 0.0
  %346 = vmatprep.subr.mxu0 0.0
  %347 = vmatpush1.msra.mxu0 0.0
  %348 = vmatprep.mubr.f32.mxu0 0.0
  %349 = vmatmul.mubr.f32.gmra.mrb[0].mxu0 %v282
  %v350 = vpop.f32.mrb[0].mxu0
  %v351 = vadd.f32 %v280, %v350
  %v352 = vpop.f32.mrb[0].mxu0
  %353 = vdwg.mxu0
  %354 = vst [vmem:[%s6] sm:$0x1] %v351
  // Predicated region
  $region26: #{qnet_forward.1} parent=0 // pred_check
    _
  $region27: #{qnet_forward.1} parent=0 // pred_check_branch
    %356 = sbr.rel (0) target = $region29
  $region28: #{qnet_forward.1} parent=0 // pred_region
    _
  $region29: #{qnet_forward.1} parent=0 // pred_fallthru
    _
  // Predicated region
  $region30: #{qnet_forward.1} parent=0 // pred_check
    _
  $region31: #{qnet_forward.1} parent=0 // pred_check_branch
    %358 = sbr.rel (0) target = $region33
  $region32: #{qnet_forward.1} parent=0 // pred_region
    _
  $region33: #{qnet_forward.1} parent=0 // pred_fallthru
    _

</llo_original>
